<compile_context>
chip_gen: v5e
topology: v5e:2x2
jax: 0.10.0
libtpu: 0.0.40
codegen_flags: <defaults>
</compile_context>

<pallas_src>
import numpy as np
import jax
import jax.numpy as jnp
from jax.experimental import pallas as pl
from jax.experimental.pallas import tpu as pltpu


def _make_blur_down_kernel(TN, H, W, Ho, WOP, factor, py0, taps):
    fh = len(taps)

    def kernel(x_ref, dwt_ref, o_ref, acc_ref):
        # x_ref:   [TN, H, W]     raw (unpadded) input images
        # dwt_ref: [W, WOP]       width FIR+downsample matrix (padding folded in)
        # o_ref:   [TN, Ho, WOP]  output block (lane-dense, zero-padded width)
        # acc_ref: [TN, Ho, W]    f32 scratch for the height pass
        acc_ref[...] = jnp.zeros_like(acc_ref)

        # ---- Height pass: fh-tap FIR + downsample-by-factor on the VPU ----
        for u in range(fh):                    # static Python loop (4 taps)
            off = u - py0                      # source row offset for output row 0
            i0 = 0 if off >= 0 else (-off + factor - 1) // factor
            i1 = min(Ho, (H - 1 - off) // factor + 1)
            if i1 <= i0:
                continue                       # tap never lands in range
            n = i1 - i0
            src0 = factor * i0 + off
            if factor > 1:
                sl = x_ref[:, pl.ds(src0, n, stride=factor), :]
            else:
                sl = x_ref[:, pl.ds(src0, n), :]
            # out-of-range source rows are simply dropped == zero padding
            acc_ref[:, i0:i1, :] += sl.astype(jnp.float32) * taps[u]

        # ---- Width pass: one big MXU matmul for the whole image group ----
        tmp = acc_ref[...].reshape(TN * Ho, W)
        out = jnp.dot(tmp, dwt_ref[...].astype(jnp.float32),
                      preferred_element_type=jnp.float32)
        o_ref[...] = out.reshape(TN, Ho, WOP).astype(o_ref.dtype)

    return kernel


def blur_downsample(x, kernel=(1, 3, 3, 1), factor=2):
    """Equivalent of BlurDownsample(kernel, factor, padding_mode='zeros')(x).

    x: [B, C, H, W] float array (NCHW, same as the PyTorch module).
    """
    B, C, H, W = x.shape
    p = len(kernel)
    px0 = (p - factor + 1) // 2
    px1 = (p - factor) // 2
    py0 = px0
    py1 = px1

    # setup_filter: f = outer(k,k)/sum(k)^2, flipped (convolution).
    # Separable per-axis taps = flip(k)/sum(k).
    k = np.asarray(kernel, np.float64)
    taps = [float(t) for t in (k[::-1] / k.sum())]

    fh = fw = p
    Ho = (H + py0 + py1 - fh) // factor + 1
    Wo = (W + px0 + px1 - fw) // factor + 1

    LANE, SUB = 128, 8
    WOP = ((Wo + LANE - 1) // LANE) * LANE     # lane-dense output width

    # Width-pass matrix [W, WOP]: zero padding folded in (out-of-range taps are
    # dropped, NOT renormalized -- identical to zero padding), plus zero
    # columns up to WOP so output stores are unmasked.
    DwT_np = np.zeros((W, WOP), np.float32)
    for j in range(Wo):
        for u in range(fw):
            col = factor * j + u - px0
            if 0 <= col < W:
                DwT_np[col, j] = taps[u]
    DwT = jnp.asarray(DwT_np)

    N = B * C
    x_flat = x.reshape(N, H, W)

    # ---- TN: images per grid step, sized against VMEM (v7x has only 64 MiB) ----
    itemsize = jnp.dtype(x.dtype).itemsize
    in_tile = (-(-H // SUB) * SUB) * (-(-W // LANE) * LANE) * itemsize
    out_tile = (-(-Ho // SUB) * SUB) * WOP * itemsize
    acc_tile = (-(-Ho // SUB) * SUB) * (-(-W // LANE) * LANE) * 4
    per_img = 2 * (in_tile + out_tile) + acc_tile      # double-buffered in/out
    budget = 24 * 1024 * 1024
    TN = max(1, min(N, budget // max(per_img, 1)))
    TN = min(TN, max(1, 1024 // max(H, 1)))            # keep matmul M dim modest
    if N >= 2 and -(-N // TN) < 2:
        TN = -(-N // 2)                                # grid >= 2 (v7x: 2 TCs)
    G = -(-N // TN)
    Npad = G * TN
    if Npad != N:
        x_flat = jnp.pad(x_flat, ((0, Npad - N), (0, 0), (0, 0)))

    kern = _make_blur_down_kernel(TN, H, W, Ho, WOP, factor, py0, taps)

    cost = pl.CostEstimate(
        flops=2 * Npad * Ho * W * (fh + WOP),
        transcendentals=0,
        bytes_accessed=(Npad * H * W + Npad * Ho * WOP) * itemsize + W * WOP * 4,
    )

    out_flat = pl.pallas_call(
        kern,
        out_shape=jax.ShapeDtypeStruct((Npad, Ho, WOP), x.dtype),
        grid_spec=pltpu.PrefetchScalarGridSpec(
            num_scalar_prefetch=0,
            grid=(G,),
            in_specs=[
                pl.BlockSpec((TN, H, W), lambda n: (n, 0, 0)),
                pl.BlockSpec((W, WOP), lambda n: (0, 0)),
            ],
            out_specs=pl.BlockSpec((TN, Ho, WOP), lambda n: (n, 0, 0)),
            scratch_shapes=[pltpu.VMEM((TN, Ho, W), jnp.float32)],
        ),
        compiler_params=pltpu.CompilerParams(
            dimension_semantics=("parallel",),
            vmem_limit_bytes=48 * 1024 * 1024,
        ),
        cost_estimate=cost,
    )(x_flat, DwT)

    return out_flat[:N, :, :Wo].reshape(B, C, Ho, Wo)


def _reference_numpy(x, kernel=(1, 3, 3, 1), factor=2):
    """Direct loop reference matching _upfirdn2d_ref semantics (zeros padding)."""
    x = np.asarray(x, np.float64)
    B, C, H, W = x.shape
    p = len(kernel)
    px0 = (p - factor + 1) // 2
    px1 = (p - factor) // 2
    py0, py1 = px0, px1
    k = np.asarray(kernel, np.float64)
    f2 = np.outer(k, k) / (k.sum() ** 2)
    f2 = f2[::-1, ::-1]  # flip (convolution)
    xp = np.pad(x, ((0, 0), (0, 0), (py0, py1), (px0, px1)))
    Ho = (H + py0 + py1 - p) // factor + 1
    Wo = (W + px0 + px1 - p) // factor + 1
    out = np.zeros((B, C, Ho, Wo), np.float64)
    for b in range(B):
        for c in range(C):
            for i in range(Ho):
                for j in range(Wo):
                    patch = xp[b, c, factor * i:factor * i + p,
                               factor * j:factor * j + p]
                    out[b, c, i, j] = np.sum(patch * f2)
    return out


if __name__ == "__main__":
    key = jax.random.PRNGKey(0)
    B, C, H, W = 2, 4, 16, 16
    x = jax.random.normal(key, (B, C, H, W), dtype=jnp.float32)

    out = blur_downsample(x)
    out = jax.block_until_ready(out)

    ref = _reference_numpy(np.asarray(x))
    assert out.shape == (B, C, H // 2, W // 2), out.shape
    np.testing.assert_allclose(np.asarray(out), ref, rtol=1e-5, atol=1e-5)

    print("KERNEL_OK")
</pallas_src>

<mosaic_0001>
module attributes {stable_mosaic.version = 11 : i64} {
  func.func @kernel(%arg0: i32, %arg1: memref<4x16x16xf32, #tpu.memory_space<vmem>>, %arg2: memref<16x128xf32, #tpu.memory_space<vmem>>, %arg3: memref<4x8x128xf32, #tpu.memory_space<vmem>>, %arg4: memref<4x8x16xf32, #tpu.memory_space<vmem>>) attributes {dimension_semantics = [#tpu.dimension_semantics<parallel>], iteration_bounds = array<i64: 2>, scalar_prefetch = 0 : i64, scratch_operands = 1 : i64, tpu.core_type = #tpu.core_type<tc>, window_params = [{transform_indices = @transform_0, window_bounds = array<i64: 4, 16, 16>}, {pipeline_mode = #tpu.pipeline_mode<synchronous>, transform_indices = @transform_1, window_bounds = array<i64: 16, 128>}, {transform_indices = @transform_2, window_bounds = array<i64: 4, 8, 128>}]} {
    %cst = arith.constant 0.000000e+00 : f32
    %0 = vector.broadcast %cst : f32 to vector<4x8x16xf32>
    %c0 = arith.constant 0 : index
    %c0_0 = arith.constant 0 : index
    %c0_1 = arith.constant 0 : index
    %1 = vector.load %arg4[%c0, %c0_0, %c0_1] : memref<4x8x16xf32, #tpu.memory_space<vmem>>, vector<4x8x16xf32>
    tpu.vector_store %arg4[%c0, %c0_0, %c0_1], %0 {strides = array<i32>} : memref<4x8x16xf32, #tpu.memory_space<vmem>>, vector<4x8x16xf32>,
    %c0_2 = arith.constant 0 : index
    %c1 = arith.constant 1 : index
    %c0_3 = arith.constant 0 : index
    %2 = tpu.strided_load %arg1[%c0_2, %c1, %c0_3] {strides = array<i32: 1, 2, 1>} : memref<4x16x16xf32, #tpu.memory_space<vmem>>, vector<4x7x16xf32>
    %c0_4 = arith.constant 0 : index
    %c1_5 = arith.constant 1 : index
    %c0_6 = arith.constant 0 : index
    %3 = vector.load %arg4[%c0_4, %c1_5, %c0_6] : memref<4x8x16xf32, #tpu.memory_space<vmem>>, vector<4x7x16xf32>
    %cst_7 = arith.constant 1.250000e-01 : f32
    %4 = vector.broadcast %cst_7 : f32 to vector<4x7x16xf32>
    %5 = arith.mulf %2, %4 : vector<4x7x16xf32>
    %6 = arith.addf %3, %5 : vector<4x7x16xf32>
    %c0_8 = arith.constant 0 : index
    %c1_9 = arith.constant 1 : index
    %c0_10 = arith.constant 0 : index
    %7 = vector.load %arg4[%c0_8, %c1_9, %c0_10] : memref<4x8x16xf32, #tpu.memory_space<vmem>>, vector<4x7x16xf32>
    tpu.vector_store %arg4[%c0_8, %c1_9, %c0_10], %6 {strides = array<i32>} : memref<4x8x16xf32, #tpu.memory_space<vmem>>, vector<4x7x16xf32>,
    %c0_11 = arith.constant 0 : index
    %c0_12 = arith.constant 0 : index
    %c0_13 = arith.constant 0 : index
    %8 = tpu.strided_load %arg1[%c0_11, %c0_12, %c0_13] {strides = array<i32: 1, 2, 1>} : memref<4x16x16xf32, #tpu.memory_space<vmem>>, vector<4x8x16xf32>
    %c0_14 = arith.constant 0 : index
    %c0_15 = arith.constant 0 : index
    %c0_16 = arith.constant 0 : index
    %9 = vector.load %arg4[%c0_14, %c0_15, %c0_16] : memref<4x8x16xf32, #tpu.memory_space<vmem>>, vector<4x8x16xf32>
    %cst_17 = arith.constant 3.750000e-01 : f32
    %10 = vector.broadcast %cst_17 : f32 to vector<4x8x16xf32>
    %11 = arith.mulf %8, %10 : vector<4x8x16xf32>
    %12 = arith.addf %9, %11 : vector<4x8x16xf32>
    %c0_18 = arith.constant 0 : index
    %c0_19 = arith.constant 0 : index
    %c0_20 = arith.constant 0 : index
    %13 = vector.load %arg4[%c0_18, %c0_19, %c0_20] : memref<4x8x16xf32, #tpu.memory_space<vmem>>, vector<4x8x16xf32>
    tpu.vector_store %arg4[%c0_18, %c0_19, %c0_20], %12 {strides = array<i32>} : memref<4x8x16xf32, #tpu.memory_space<vmem>>, vector<4x8x16xf32>,
    %c0_21 = arith.constant 0 : index
    %c1_22 = arith.constant 1 : index
    %c0_23 = arith.constant 0 : index
    %14 = tpu.strided_load %arg1[%c0_21, %c1_22, %c0_23] {strides = array<i32: 1, 2, 1>} : memref<4x16x16xf32, #tpu.memory_space<vmem>>, vector<4x8x16xf32>
    %c0_24 = arith.constant 0 : index
    %c0_25 = arith.constant 0 : index
    %c0_26 = arith.constant 0 : index
    %15 = vector.load %arg4[%c0_24, %c0_25, %c0_26] : memref<4x8x16xf32, #tpu.memory_space<vmem>>, vector<4x8x16xf32>
    %cst_27 = arith.constant 3.750000e-01 : f32
    %16 = vector.broadcast %cst_27 : f32 to vector<4x8x16xf32>
    %17 = arith.mulf %14, %16 : vector<4x8x16xf32>
    %18 = arith.addf %15, %17 : vector<4x8x16xf32>
    %c0_28 = arith.constant 0 : index
    %c0_29 = arith.constant 0 : index
    %c0_30 = arith.constant 0 : index
    %19 = vector.load %arg4[%c0_28, %c0_29, %c0_30] : memref<4x8x16xf32, #tpu.memory_space<vmem>>, vector<4x8x16xf32>
    tpu.vector_store %arg4[%c0_28, %c0_29, %c0_30], %18 {strides = array<i32>} : memref<4x8x16xf32, #tpu.memory_space<vmem>>, vector<4x8x16xf32>,
    %c0_31 = arith.constant 0 : index
    %c2 = arith.constant 2 : index
    %c0_32 = arith.constant 0 : index
    %20 = tpu.strided_load %arg1[%c0_31, %c2, %c0_32] {strides = array<i32: 1, 2, 1>} : memref<4x16x16xf32, #tpu.memory_space<vmem>>, vector<4x7x16xf32>
    %c0_33 = arith.constant 0 : index
    %c0_34 = arith.constant 0 : index
    %c0_35 = arith.constant 0 : index
    %21 = vector.load %arg4[%c0_33, %c0_34, %c0_35] : memref<4x8x16xf32, #tpu.memory_space<vmem>>, vector<4x7x16xf32>
    %cst_36 = arith.constant 1.250000e-01 : f32
    %22 = vector.broadcast %cst_36 : f32 to vector<4x7x16xf32>
    %23 = arith.mulf %20, %22 : vector<4x7x16xf32>
    %24 = arith.addf %21, %23 : vector<4x7x16xf32>
    %c0_37 = arith.constant 0 : index
    %c0_38 = arith.constant 0 : index
    %c0_39 = arith.constant 0 : index
    %25 = vector.load %arg4[%c0_37, %c0_38, %c0_39] : memref<4x8x16xf32, #tpu.memory_space<vmem>>, vector<4x7x16xf32>
    tpu.vector_store %arg4[%c0_37, %c0_38, %c0_39], %24 {strides = array<i32>} : memref<4x8x16xf32, #tpu.memory_space<vmem>>, vector<4x7x16xf32>,
    %c0_40 = arith.constant 0 : index
    %c0_41 = arith.constant 0 : index
    %c0_42 = arith.constant 0 : index
    %26 = vector.load %arg4[%c0_40, %c0_41, %c0_42] : memref<4x8x16xf32, #tpu.memory_space<vmem>>, vector<4x8x16xf32>
    %27 = vector.shape_cast %26 : vector<4x8x16xf32> to vector<32x16xf32>
    %c0_43 = arith.constant 0 : index
    %c0_44 = arith.constant 0 : index
    %28 = vector.load %arg2[%c0_43, %c0_44] : memref<16x128xf32, #tpu.memory_space<vmem>>, vector<16x128xf32>
    %cst_45 = arith.constant dense<0.000000e+00> : vector<32x128xf32>
    %29 = tpu.matmul %27, %28, %cst_45 {dimension_numbers = #tpu.dot_dimension_numbers<[1], [0], [0], [1], [0, 0, 1, 1], [], []>} : vector<32x16xf32>, vector<16x128xf32>, vector<32x128xf32> -> vector<32x128xf32>
    %30 = vector.shape_cast %29 : vector<32x128xf32> to vector<4x8x128xf32>
    %c0_46 = arith.constant 0 : index
    %c0_47 = arith.constant 0 : index
    %c0_48 = arith.constant 0 : index
    %31 = vector.load %arg3[%c0_46, %c0_47, %c0_48] : memref<4x8x128xf32, #tpu.memory_space<vmem>>, vector<4x8x128xf32>
    tpu.vector_store %arg3[%c0_46, %c0_47, %c0_48], %30 {strides = array<i32>} : memref<4x8x128xf32, #tpu.memory_space<vmem>>, vector<4x8x128xf32>,
    return
  }
  func.func @transform_0(%arg0: i32) -> (i32, i32, i32) {
    %c0_i32 = arith.constant 0 : i32
    %c0_i32_0 = arith.constant 0 : i32
    %c0_i32_1 = arith.constant 0 : i32
    return %arg0, %c0_i32, %c0_i32_0 : i32, i32, i32
  }
  func.func @transform_1(%arg0: i32) -> (i32, i32) {
    %c0_i32 = arith.constant 0 : i32
    %c0_i32_0 = arith.constant 0 : i32
    %c0_i32_1 = arith.constant 0 : i32
    return %c0_i32, %c0_i32_0 : i32, i32
  }
  func.func @transform_2(%arg0: i32) -> (i32, i32, i32) {
    %c0_i32 = arith.constant 0 : i32
    %c0_i32_0 = arith.constant 0 : i32
    %c0_i32_1 = arith.constant 0 : i32
    return %arg0, %c0_i32, %c0_i32_0 : i32, i32, i32
  }
}

</mosaic_0001>

<llo_original>
// kernel: tpu_custom_call.1
$region0: #{tpu_custom_call.1}
  #allocation0 [shape = 'u32[]', space=smem, size = 0x4, offset = 0x4, fixed_abs, tag = 'smem constant byte address 0x4 - core index']
  #allocation1 [shape = 'u32[72,128]{1,0:T(1,128)}', space=vmem, size = 0x9000, scoped, tag = 'internal scratch']
  #allocation2 [shape = 'f32[4,8,16]{2,1,0:T(8,128)}', space=vmem, size = 0x4000, scoped, tag = 'scratch operand']
  %s0 = inlined_call_operand.hbm [shape: f32[8,16,16], index: 0, kind: input, shape index: {}]
  %s1 = inlined_call_operand.hbm [shape: f32[16,128], index: 1, kind: input, shape index: {}]
  %s2 = inlined_call_operand.hbm [shape: f32[8,8,128], index: 2, kind: output, shape index: {}]
  %s3 = sld [smem:[#allocation0]]
  $region49: #{tpu_custom_call.1} parent=0
    _
  %s5 = ssub.s32 1, %s3
  %s6 = scalar_select 0, %s5, %s3
  $region1: #{tpu_custom_call.1} parent=0
    #allocation3 [shape = 'u8[65536]{0}', space=vmem, size = 0x10000, scoped, tag = 'input window, operand 0']
    #allocation4 [shape = 's32[2]{0}', space=sflag, size = 0x8, scoped, tag = 'scoped memory for tpu_custom_call.1']
    #allocation5 [shape = 's32[2]{0}', space=sflag, size = 0x8, scoped, tag = 'scoped memory for tpu_custom_call.1']
    #allocation6 [shape = 'u8[8192]{0}', space=vmem, size = 0x2000, scoped, tag = 'input window, operand 1, single buffered']
    #allocation7 [shape = 's32[1]{0}', space=sflag, size = 0x4, scoped, tag = 'scoped memory for tpu_custom_call.1']
    #allocation8 [shape = 'u8[32768]{0}', space=vmem, size = 0x8000, scoped, tag = 'output window, operand 0']
    %7 = vsyncpa [#allocation4], 0
    %s8 = scalar_lea.sflag [#allocation4], 1
    %9 = vsyncpa %s8, 0
    %10 = vsyncpa [#allocation7], 0
    %11 = vsyncpa [#allocation5], 0
    %s12 = scalar_lea.sflag [#allocation5], 1
    %13 = vsyncpa %s12, 0
    loop: start=0, step=1, limit=4
    $region2: #{tpu_custom_call.1} parent=1 // loop_pre_header
      _
    $region3: #{tpu_custom_call.1} parent=1 // loop_header
      %s15 = sphi 0, %s19
      %p16 = scmp.ge.s32.totalorder %s15, 4
      %s25 = sphi 0, %s27
      %s28 = sphi 0, %s25
      %s29 = sphi 0, %s28
      %s45 = sphi 0, %s29
      %s49 = sphi 0, %s49
      %s51 = sphi 0, %s49
      %s52 = sphi 0, %s51
      %s66 = sphi 0, %s52
      %s72 = sphi 0, %s74
      %s75 = sphi 0, %s72
      %s76 = sphi 0, %s75
      %s92 = sphi 0, %s76
    $region4: #{tpu_custom_call.1} parent=1 // loop_header_branch
      %18 = sbr.rel (%p16) target = $region8
    $region5: #{tpu_custom_call.1} parent=1 // loop_body
      %s20 = ssub.s32 %s15, 1
      %s21 = ssub.s32 %s15, 2
      %s22 = sadd.s32 %s15, 1
      %s23 = ssub.s32 %s15, %s22
      %p24 = scmp.eq.s32.totalorder %s23, 0
      %s26 = sadd.s32 %s25, 1
      %s27 = scalar_select %p24, %s25, %s26
      %p30 = pneg %p24
      %p31 = scmp.eq.s32.totalorder %s15, 1
      %p32 = por %p30, %p31
      %p33 = scmp.ne.s32.totalorder %s25, %s28
      %p34 = scmp.eq.s32.totalorder %s15, 0
      %p35 = por %p33, %p34
      %p36 = scmp.ne.s32.totalorder %s25, %s28
      %p37 = scmp.eq.s32.totalorder %s20, 1
      %p38 = por %p36, %p37
      %p39 = scmp.ne.s32.totalorder %s28, %s29
      %p40 = scmp.eq.s32.totalorder %s20, 0
      %p41 = por %p39, %p40
      %p42 = scmp.ne.s32.totalorder %s28, %s29
      %p43 = scmp.eq.s32.totalorder %s21, 1
      %p44 = por %p42, %p43
      %p46 = scmp.ne.s32.totalorder %s29, %s45
      %p47 = scmp.eq.s32.totalorder %s21, 0
      %p48 = por %p46, %p47
      %s50 = sadd.s32 %s49, 1
      %p53 = scmp.eq.s32.totalorder %s15, 1
      %p54 = scmp.ne.s32.totalorder %s49, %s51
      %p55 = scmp.eq.s32.totalorder %s15, 0
      %p56 = por %p54, %p55
      %p57 = scmp.ne.s32.totalorder %s49, %s51
      %p58 = scmp.eq.s32.totalorder %s20, 1
      %p59 = por %p57, %p58
      %p60 = scmp.ne.s32.totalorder %s51, %s52
      %p61 = scmp.eq.s32.totalorder %s20, 0
      %p62 = por %p60, %p61
      %p63 = scmp.ne.s32.totalorder %s51, %s52
      %p64 = scmp.eq.s32.totalorder %s21, 1
      %p65 = por %p63, %p64
      %p67 = scmp.ne.s32.totalorder %s52, %s66
      %p68 = scmp.eq.s32.totalorder %s21, 0
      %p69 = por %p67, %p68
      %s70 = ssub.s32 %s15, %s22
      %p71 = scmp.eq.s32.totalorder %s70, 0
      %s73 = sadd.s32 %s72, 1
      %s74 = scalar_select %p71, %s72, %s73
      %p77 = pneg %p71
      %p78 = scmp.eq.s32.totalorder %s15, 1
      %p79 = por %p77, %p78
      %p80 = scmp.ne.s32.totalorder %s72, %s75
      %p81 = scmp.eq.s32.totalorder %s15, 0
      %p82 = por %p80, %p81
      %p83 = scmp.ne.s32.totalorder %s72, %s75
      %p84 = scmp.eq.s32.totalorder %s20, 1
      %p85 = por %p83, %p84
      %p86 = scmp.ne.s32.totalorder %s75, %s76
      %p87 = scmp.eq.s32.totalorder %s20, 0
      %p88 = por %p86, %p87
      %p89 = scmp.ne.s32.totalorder %s75, %s76
      %p90 = scmp.eq.s32.totalorder %s21, 1
      %p91 = por %p89, %p90
      %p93 = scmp.ne.s32.totalorder %s76, %s92
      %p94 = scmp.eq.s32.totalorder %s21, 0
      %p95 = por %p93, %p94
      %p96 = scmp.le.s32.totalorder 1, %s15
      %p97 = scmp.lt.s32.totalorder %s15, 3
      %p98 = pnand %p96, %p97
      %p99 = pneg %p98
      // Predicated region
      $region9: #{tpu_custom_call.1} parent=5 // pred_check
        _
      $region10: #{tpu_custom_call.1} parent=5 // pred_check_branch
        %101 = sbr.rel (%p98) target = $region12
      $region11: #{tpu_custom_call.1} parent=5 // pred_region
        %s102 = ssub.s32 %s15, 1
        // Predicated region
        $region13: #{tpu_custom_call.1} parent=11 // pred_check
          %p103 = pneg %p62
        $region14: #{tpu_custom_call.1} parent=11 // pred_check_branch
          %105 = sbr.rel (%p103) target = $region16
        $region15: #{tpu_custom_call.1} parent=11 // pred_region
          %107 = vsyncadd [#allocation7], 0
          %s108 = sshll.u32 %s1, 4
          %s109 = int_to_ptr.hbm [resolvable:$true] %s108
          %s110 = sshll.u32 [#allocation6], 4
          %s111 = int_to_ptr.vmem [resolvable:$true] %s110
          %116 = dma.hbm_to_vmem [thread:$0]  %s109, 256, %s111, [#allocation7], 128, 128, 8
        $region16: #{tpu_custom_call.1} parent=11 // pred_fallthru
          _
      $region12: #{tpu_custom_call.1} parent=5 // pred_fallthru
        _
      %p117 = scmp.lt.s32.totalorder %s15, 2
      // Predicated region
      $region17: #{tpu_custom_call.1} parent=5 // pred_check
        %p118 = pneg %p117
      $region18: #{tpu_custom_call.1} parent=5 // pred_check_branch
        %120 = sbr.rel (%p118) target = $region20
      $region19: #{tpu_custom_call.1} parent=5 // pred_region
        // Predicated region
        $region21: #{tpu_custom_call.1} parent=19 // pred_check
          %p121 = pneg %p35
        $region22: #{tpu_custom_call.1} parent=19 // pred_check_branch
          %123 = sbr.rel (%p121) target = $region24
        $region23: #{tpu_custom_call.1} parent=19 // pred_region
          %s124 = sand.u32 %s25, 1
          %s125 = scalar_lea.sflag [#allocation4], %s124
          %s126 = sand.u32 %s25, 1
          %s127 = smul.addr %s126, 64
          %s128 = scalar_lea.vmem [#allocation3], %s127
          %s129 = smul.u32 4, %s15
          %131 = vsyncadd %s125, 0
          %s132 = smul.addr %s129, 2
          %s133 = smul.addr %s132, 8
          %s134 = scalar_lea.hbm %s0, %s133
          %s135 = sshll.u32 %s134, 4
          %s136 = int_to_ptr.hbm [resolvable:$true] %s135
          %s137 = sshll.u32 %s128, 4
          %s138 = int_to_ptr.vmem [resolvable:$true] %s137
          %143 = dma.hbm_to_vmem [thread:$0]  %s136, 1024, %s138, %s125, 128, 128, 8
        $region24: #{tpu_custom_call.1} parent=19 // pred_fallthru
          _
      $region20: #{tpu_custom_call.1} parent=5 // pred_fallthru
        _
      %p144 = scmp.le.s32.totalorder 1, %s15
      %p145 = scmp.lt.s32.totalorder %s15, 3
      %p146 = pnand %p144, %p145
      %p147 = pneg %p146
      // Predicated region
      $region25: #{tpu_custom_call.1} parent=5 // pred_check
        _
      $region26: #{tpu_custom_call.1} parent=5 // pred_check_branch
        %149 = sbr.rel (%p146) target = $region28
      $region27: #{tpu_custom_call.1} parent=5 // pred_region
        %s150 = ssub.s32 %s15, 1
        %s151 = sand.u32 %s28, 1
        %s152 = scalar_lea.sflag [#allocation4], %s151
        %s153 = sand.u32 %s28, 1
        %s154 = smul.addr %s153, 64
        %s155 = scalar_lea.vmem [#allocation3], %s154
        // Predicated region
        $region29: #{tpu_custom_call.1} parent=27 // pred_check
          %p156 = pneg %p41
        $region30: #{tpu_custom_call.1} parent=27 // pred_check_branch
          %158 = sbr.rel (%p156) target = $region32
        $region31: #{tpu_custom_call.1} parent=27 // pred_region
          %160 = dma.done %s152, 1024
        $region32: #{tpu_custom_call.1} parent=27 // pred_fallthru
          _
        // Predicated region
        $region33: #{tpu_custom_call.1} parent=27 // pred_check
          %p161 = pneg %p62
        $region34: #{tpu_custom_call.1} parent=27 // pred_check_branch
          %163 = sbr.rel (%p161) target = $region36
        $region35: #{tpu_custom_call.1} parent=27 // pred_region
          %165 = dma.done [#allocation7], 256
        $region36: #{tpu_custom_call.1} parent=27 // pred_fallthru
          _
        %s166 = sand.u32 %s28, 1
        %s167 = scalar_lea.sflag [#allocation4], %s166
        %s168 = sand.u32 %s28, 1
        %s169 = smul.addr %s168, 64
        %s170 = scalar_lea.vmem [#allocation3], %s169
        %p171 = pneg %p41
        %p172 = pneg %p38
        %p173 = pneg %p62
        %p174 = pneg %p59
        %p175 = pneg %p88
        %p176 = pneg %p85
        %s177 = sand.u32 %s75, 1
        %s178 = scalar_lea.sflag [#allocation5], %s177
        %s179 = sand.u32 %s75, 1
        %s180 = smul.addr %s179, 32
        %s181 = scalar_lea.vmem [#allocation8], %s180
        %s182 = smul.u32 4, %s20
        %s183 = smul.u32 4, %s20
        %vm184 = vcmask 130048
        %185 = vst.msk [vmem:[#allocation2] sm:$0xff] %vm184, 0.0
        %186 = vst.msk [vmem:[#allocation2 + $0x8] sm:$0xff] %vm184, 0.0
        %187 = vst.msk [vmem:[#allocation2 + $0x10] sm:$0xff] %vm184, 0.0
        %188 = vst.msk [vmem:[#allocation2 + $0x18] sm:$0xff] %vm184, 0.0
        %s189 = scalar_lea.vmem %s155, 1 [#allocation3]
        %v190 = vld [vmem:[%s189] ss:$2 sm:$0x7f]
        %s191 = scalar_lea.vmem %s155, 17 [#allocation3]
        %v192 = vld [vmem:[%s191] ss:$2 sm:$0x7f]
        %s193 = scalar_lea.vmem %s155, 33 [#allocation3]
        %v194 = vld [vmem:[%s193] ss:$2 sm:$0x7f]
        %s195 = scalar_lea.vmem %s155, 49 [#allocation3]
        %v196 = vld [vmem:[%s195] ss:$2 sm:$0x7f]
        %v197 = vld [vmem:[#allocation2 + $0x1] sm:$0x7f]
        %v198 = vld [vmem:[#allocation2 + $0x9] sm:$0x7f]
        %v199 = vld [vmem:[#allocation2 + $0x11] sm:$0x7f]
        %v200 = vld [vmem:[#allocation2 + $0x19] sm:$0x7f]
        %v201 = vmul.f32 %v190, 0.125
        %v202 = vmul.f32 %v192, 0.125
        %v203 = vmul.f32 %v194, 0.125
        %v204 = vmul.f32 %v196, 0.125
        %v205 = vadd.f32 %v197, %v201
        %v206 = vadd.f32 %v198, %v202
        %v207 = vadd.f32 %v199, %v203
        %v208 = vadd.f32 %v200, %v204
        %vm209 = vcmask 129024
        %210 = vst.msk [vmem:[#allocation2 + $0x1] sm:$0x7f] %vm209, %v205
        %211 = vst.msk [vmem:[#allocation2 + $0x9] sm:$0x7f] %vm209, %v206
        %212 = vst.msk [vmem:[#allocation2 + $0x11] sm:$0x7f] %vm209, %v207
        %213 = vst.msk [vmem:[#allocation2 + $0x19] sm:$0x7f] %vm209, %v208
        %v214 = vld [vmem:[%s155] ss:$2 sm:$0xff]
        %s215 = scalar_lea.vmem %s155, 16 [#allocation3]
        %v216 = vld [vmem:[%s215] ss:$2 sm:$0xff]
        %s217 = scalar_lea.vmem %s155, 32 [#allocation3]
        %v218 = vld [vmem:[%s217] ss:$2 sm:$0xff]
        %s219 = scalar_lea.vmem %s155, 48 [#allocation3]
        %v220 = vld [vmem:[%s219] ss:$2 sm:$0xff]
        %v221 = vld [vmem:[#allocation2] sm:$0xff]
        %v222 = vld [vmem:[#allocation2 + $0x8] sm:$0xff]
        %v223 = vld [vmem:[#allocation2 + $0x10] sm:$0xff]
        %v224 = vld [vmem:[#allocation2 + $0x18] sm:$0xff]
        %v225 = vmul.f32 %v214, 0.375
        %v226 = vmul.f32 %v216, 0.375
        %v227 = vmul.f32 %v218, 0.375
        %v228 = vmul.f32 %v220, 0.375
        %v229 = vadd.f32 %v221, %v225
        %v230 = vadd.f32 %v222, %v226
        %v231 = vadd.f32 %v223, %v227
        %v232 = vadd.f32 %v224, %v228
        %233 = vst.msk [vmem:[#allocation2] sm:$0xff] %vm184, %v229
        %234 = vst.msk [vmem:[#allocation2 + $0x8] sm:$0xff] %vm184, %v230
        %235 = vst.msk [vmem:[#allocation2 + $0x10] sm:$0xff] %vm184, %v231
        %236 = vst.msk [vmem:[#allocation2 + $0x18] sm:$0xff] %vm184, %v232
        %v237 = vld [vmem:[%s189] ss:$2 sm:$0xff]
        %v238 = vld [vmem:[%s191] ss:$2 sm:$0xff]
        %v239 = vld [vmem:[%s193] ss:$2 sm:$0xff]
        %v240 = vld [vmem:[%s195] ss:$2 sm:$0xff]
        %v241 = vld [vmem:[#allocation2] sm:$0xff]
        %v242 = vld [vmem:[#allocation2 + $0x8] sm:$0xff]
        %v243 = vld [vmem:[#allocation2 + $0x10] sm:$0xff]
        %v244 = vld [vmem:[#allocation2 + $0x18] sm:$0xff]
        %v245 = vmul.f32 %v237, 0.375
        %v246 = vmul.f32 %v238, 0.375
        %v247 = vmul.f32 %v239, 0.375
        %v248 = vmul.f32 %v240, 0.375
        %v249 = vadd.f32 %v241, %v245
        %v250 = vadd.f32 %v242, %v246
        %v251 = vadd.f32 %v243, %v247
        %v252 = vadd.f32 %v244, %v248
        %253 = vst.msk [vmem:[#allocation2] sm:$0xff] %vm184, %v249
        %254 = vst.msk [vmem:[#allocation2 + $0x8] sm:$0xff] %vm184, %v250
        %255 = vst.msk [vmem:[#allocation2 + $0x10] sm:$0xff] %vm184, %v251
        %256 = vst.msk [vmem:[#allocation2 + $0x18] sm:$0xff] %vm184, %v252
        %s257 = scalar_lea.vmem %s155, 2 [#allocation3]
        %v258 = vld [vmem:[%s257] ss:$2 sm:$0x7f]
        %s259 = scalar_lea.vmem %s155, 18 [#allocation3]
        %v260 = vld [vmem:[%s259] ss:$2 sm:$0x7f]
        %s261 = scalar_lea.vmem %s155, 34 [#allocation3]
        %v262 = vld [vmem:[%s261] ss:$2 sm:$0x7f]
        %s263 = scalar_lea.vmem %s155, 50 [#allocation3]
        %v264 = vld [vmem:[%s263] ss:$2 sm:$0x7f]
        %v265 = vld [vmem:[#allocation2] sm:$0x7f]
        %v266 = vld [vmem:[#allocation2 + $0x8] sm:$0x7f]
        %v267 = vld [vmem:[#allocation2 + $0x10] sm:$0x7f]
        %v268 = vld [vmem:[#allocation2 + $0x18] sm:$0x7f]
        %v269 = vmul.f32 %v258, 0.125
        %v270 = vmul.f32 %v260, 0.125
        %v271 = vmul.f32 %v262, 0.125
        %v272 = vmul.f32 %v264, 0.125
        %v273 = vadd.f32 %v265, %v269
        %v274 = vadd.f32 %v266, %v270
        %v275 = vadd.f32 %v267, %v271
        %v276 = vadd.f32 %v268, %v272
        %277 = vst.msk [vmem:[#allocation2] sm:$0x7f] %vm209, %v273
        %278 = vst.msk [vmem:[#allocation2 + $0x8] sm:$0x7f] %vm209, %v274
        %279 = vst.msk [vmem:[#allocation2 + $0x10] sm:$0x7f] %vm209, %v275
        %280 = vst.msk [vmem:[#allocation2 + $0x18] sm:$0x7f] %vm209, %v276
        %v281 = vld [vmem:[#allocation2] sm:$0xff]
        %v282 = vld [vmem:[#allocation2 + $0x8] sm:$0xff]
        %v283 = vld [vmem:[#allocation2 + $0x10] sm:$0xff]
        %v284 = vld [vmem:[#allocation2 + $0x18] sm:$0xff]
        %v285 = vld [vmem:[#allocation6] sm:$0xff]
        %v286 = vld [vmem:[#allocation6 + $0x8] sm:$0xff]
        %v288 = vsel %vm184, %v281, 0
        %v291 = vsel %vm184, %v282, 0
        %v294 = vsel %vm184, %v283, 0
        %v297 = vsel %vm184, %v284, 0
        %299 = vmatpush.msra.mxu0 0.0
        %300 = vmatpush.msra.mxu0 0.0
        %301 = vmatpush.msra.mxu0 0.0
        %302 = vmatpush.msra.mxu0 0.0
        %303 = vmatpush.msra.mxu0 0.0
        %304 = vmatpush.msra.mxu0 0.0
        %305 = vmatpush.msra.mxu0 0.0
        %306 = vmatpush.msra.mxu0 0.0
        %307 = vmatpush.msra.mxu0 0.0
        %308 = vmatpush.msra.mxu0 0.0
        %309 = vmatpush.msra.mxu0 0.0
        %310 = vmatpush.msra.mxu0 0.0
        %311 = vmatpush.msra.mxu0 0.0
        %312 = vmatpush.msra.mxu0 0.0
        %313 = vmatpush.msra.mxu0 %v286
        %314 = vmatpush.msra.mxu0 %v285
        %315 = vmatmul.f32.gmra.mxu0 %v288
        %v316 = vpop.f32.mrf.mxu0
        %v317 = vadd.f32 0.0, %v316
        %318 = vmatmul.f32.gmra.mxu0 %v291
        %v319 = vpop.f32.mrf.mxu0
        %v320 = vadd.f32 0.0, %v319
        %321 = vmatmul.f32.gmra.mxu0 %v294
        %v322 = vpop.f32.mrf.mxu0
        %v323 = vadd.f32 0.0, %v322
        %324 = vmatmul.f32.gmra.mxu0 %v297
        %v325 = vpop.f32.mrf.mxu0
        %v326 = vadd.f32 0.0, %v325
        %327 = vdwg.mxu0
        %328 = vst [vmem:[%s181] sm:$0xff] %v317
        %329 = vst [vmem:[%s181 + $0x8] sm:$0xff] %v320
        %330 = vst [vmem:[%s181 + $0x10] sm:$0xff] %v323
        %331 = vst [vmem:[%s181 + $0x18] sm:$0xff] %v326
        %s332 = sand.u32 %s75, 1
        %s333 = scalar_lea.sflag [#allocation5], %s332
        %s334 = sand.u32 %s75, 1
        %s335 = smul.addr %s334, 32
        %s336 = scalar_lea.vmem [#allocation8], %s335
        // Predicated region
        $region37: #{tpu_custom_call.1} parent=27 // pred_check
          %p337 = pneg %p85
        $region38: #{tpu_custom_call.1} parent=27 // pred_check_branch
          %339 = sbr.rel (%p337) target = $region40
        $region39: #{tpu_custom_call.1} parent=27 // pred_region
          %s340 = smul.u32 4, %s20
          %342 = vsyncadd %s333, 0
          %s343 = smul.addr %s340, 8
          %s344 = scalar_lea.hbm %s2, %s343
          %s345 = sshll.u32 %s336, 4
          %s346 = int_to_ptr.vmem [resolvable:$true] %s345
          %s347 = sshll.u32 %s344, 4
          %s348 = int_to_ptr.hbm [resolvable:$true] %s347
          %353 = dma.vmem_to_hbm [thread:$0]  %s346, 512, %s348, %s333, 128, 128, 8
        $region40: #{tpu_custom_call.1} parent=27 // pred_fallthru
          _
      $region28: #{tpu_custom_call.1} parent=5 // pred_fallthru
        _
      %p354 = scmp.le.s32.totalorder 2, %s15
      // Predicated region
      $region41: #{tpu_custom_call.1} parent=5 // pred_check
        %p355 = pneg %p354
      $region42: #{tpu_custom_call.1} parent=5 // pred_check_branch
        %357 = sbr.rel (%p355) target = $region44
      $region43: #{tpu_custom_call.1} parent=5 // pred_region
        %s358 = ssub.s32 %s15, 2
        // Predicated region
        $region45: #{tpu_custom_call.1} parent=43 // pred_check
          %p359 = pneg %p91
        $region46: #{tpu_custom_call.1} parent=43 // pred_check_branch
          %361 = sbr.rel (%p359) target = $region48
        $region47: #{tpu_custom_call.1} parent=43 // pred_region
          %s362 = sand.u32 %s76, 1
          %s363 = scalar_lea.sflag [#allocation5], %s362
          %s364 = sand.u32 %s76, 1
          %s365 = smul.addr %s364, 32
          %s366 = scalar_lea.vmem [#allocation8], %s365
          %368 = dma.done %s363, 512
        $region48: #{tpu_custom_call.1} parent=43 // pred_fallthru
          _
      $region44: #{tpu_custom_call.1} parent=5 // pred_fallthru
        _
    $region6: #{tpu_custom_call.1} parent=1 // loop_footer
      %s19 = sadd.s32 1, %s15
    $region7: #{tpu_custom_call.1} parent=1 // loop_footer_branch
      %14 = sbr.rel target = $region3
    $region8: #{tpu_custom_call.1} parent=1 // loop_exit
      _
    %369 = vsyncpa [#allocation4], 1
    %s370 = scalar_lea.sflag [#allocation4], 1
    %371 = vsyncpa %s370, 1
    %372 = vsyncpa [#allocation7], 1
    %373 = vsyncpa [#allocation5], 1
    %s374 = scalar_lea.sflag [#allocation5], 1
    %375 = vsyncpa %s374, 1

</llo_original>
